<compile_context>
chip_gen: v7x
topology: tpu7x:2x2x1
jax: 0.10.0
libtpu: 0.0.40
codegen_flags: <defaults>
</compile_context>

<pallas_src>
import jax
import jax.numpy as jnp
from jax.experimental import pallas as pl
from jax.experimental.pallas import tpu as pltpu

F_IN = 28 * 28   # 784
H1 = 100
H2 = 100
F_OUT = 10
H_PAD = 128      # hidden widths zero-padded to a lane-dense 128
OUT_PAD = 128    # final output padded likewise (sliced back to 10 in wrapper)
BN_EPS = 1e-5


def _gen_budget():
    """Generation-aware tile / threshold selection, gated on VMEM capacity."""
    try:
        cap = int(pltpu.get_tpu_info().vmem_capacity_bytes)
    except Exception:
        cap = 64 << 20                       # assume the smallest (v7x-like) budget
    if cap >= (100 << 20):                   # v5e / v6e: 128 MiB physical VMEM
        return dict(tile_b=4096, fused_max_rows=4096, vmem_limit=96 << 20)
    # v7x (64 MiB physical) or unknown: stay inside the default scoped budget.
    return dict(tile_b=2048, fused_max_rows=1024, vmem_limit=None)


# -----------------------------------------------------------------------------
# Kernel A: fused single-block path (whole batch + weights resident in VMEM).
#   - one HBM read of x (bf16); two-pass f32 batch statistics
#   - BN applied as a single lane-aligned bf16 FMA
#   - three bf16 MXU matmuls (f32 accum) + ReLU, lane-dense (B, 128) store
# -----------------------------------------------------------------------------
def _netnorm_fused_kernel(x_ref, gamma_ref, beta_ref,
                          w1_ref, b1_ref, w2_ref, b2_ref, w3_ref, b3_ref,
                          o_ref):
    x = x_ref[...]                                   # (B, 784) bf16
    inv_b = 1.0 / x.shape[0]

    # Training-mode BatchNorm1d statistics in f32.  Two-pass (centered)
    # variance: x is VMEM-resident so the second pass is free and avoids the
    # sumsq/B - mean^2 catastrophic-cancellation issue.
    xf = x.astype(jnp.float32)
    mean = jnp.sum(xf, axis=0, keepdims=True) * inv_b        # (1, 784)
    xc = xf - mean
    var = jnp.sum(xc * xc, axis=0, keepdims=True) * inv_b    # biased variance
    scale = gamma_ref[...] * jax.lax.rsqrt(var + BN_EPS)     # (1, 784) f32
    shift = beta_ref[...] - mean * scale

    # BN as a lane-aligned bf16 FMA (equivalent in cost to folding into W1/b1
    # once operands are bf16; avoids a (1,784)->(784,1) relayout of `scale`).
    x_bn = x * scale.astype(jnp.bfloat16) + shift.astype(jnp.bfloat16)

    h1 = jnp.maximum(
        jnp.dot(x_bn, w1_ref[...], preferred_element_type=jnp.float32)
        + b1_ref[...], 0.0)
    h2 = jnp.maximum(
        jnp.dot(h1.astype(jnp.bfloat16), w2_ref[...],
                preferred_element_type=jnp.float32) + b2_ref[...], 0.0)
    h3 = jnp.maximum(
        jnp.dot(h2.astype(jnp.bfloat16), w3_ref[...],
                preferred_element_type=jnp.float32) + b3_ref[...], 0.0)
    o_ref[...] = h3.astype(o_ref.dtype)              # (B, 128) lane-dense store


# -----------------------------------------------------------------------------
# Kernel B1: global BN statistics for the gridded path, accumulated across the
# batch grid (output blocks are resident: constant index_map + "arbitrary").
# Column sums run on the (otherwise idle) MXU: ones(8, tile_b) @ x yields 8
# identical rows of per-feature sums at the same MXU cost as a single row
# (M is padded to the sublane tile anyway) while keeping every operand /
# result shape (8, 128)-aligned.  Accumulation stays f32.
# -----------------------------------------------------------------------------
def _bn_stats_kernel(x_ref, sum_ref, sumsq_ref):
    @pl.when(pl.program_id(0) == 0)
    def _():
        sum_ref[...] = jnp.zeros_like(sum_ref)
        sumsq_ref[...] = jnp.zeros_like(sumsq_ref)

    xf = x_ref[...].astype(jnp.float32)              # (tile_b, 784) f32
    ones = jnp.ones((8, xf.shape[0]), jnp.float32)
    sum_ref[...] += jnp.dot(ones, xf, preferred_element_type=jnp.float32)
    sumsq_ref[...] += jnp.dot(ones, xf * xf, preferred_element_type=jnp.float32)


# -----------------------------------------------------------------------------
# Kernel B2: batch-tiled matmul stack.  BN is already folded into w1/b1 (in the
# wrapper, f32), so the hot path per tile is just three bf16 matmuls + ReLU.
# Weights/biases have constant index_maps -> VMEM-resident; x / out tiles are
# double-buffered by Pallas.
# -----------------------------------------------------------------------------
def _netnorm_tile_kernel(x_ref, w1_ref, b1_ref, w2_ref, b2_ref, w3_ref, b3_ref,
                         o_ref):
    h1 = jnp.maximum(
        jnp.dot(x_ref[...], w1_ref[...], preferred_element_type=jnp.float32)
        + b1_ref[...], 0.0)
    h2 = jnp.maximum(
        jnp.dot(h1.astype(jnp.bfloat16), w2_ref[...],
                preferred_element_type=jnp.float32) + b2_ref[...], 0.0)
    h3 = jnp.maximum(
        jnp.dot(h2.astype(jnp.bfloat16), w3_ref[...],
                preferred_element_type=jnp.float32) + b3_ref[...], 0.0)
    o_ref[...] = h3.astype(o_ref.dtype)              # (tile_b, 128) lane-dense


def _pad_params(w1, b1, w2, b2, w3, b3):
    """Zero-pad hidden widths (100->128) and the output (10->128).  ReLU keeps
    the zero pad columns at zero, so the final [:, :10] slice is exact."""
    w1p = jnp.zeros((F_IN, H_PAD), jnp.float32).at[:, :H1].set(w1)
    b1p = jnp.zeros((1, H_PAD), jnp.float32).at[:, :H1].set(b1)
    w2p = jnp.zeros((H_PAD, H_PAD), jnp.float32).at[:H1, :H2].set(w2)
    b2p = jnp.zeros((1, H_PAD), jnp.float32).at[:, :H2].set(b2)
    w3p = jnp.zeros((H_PAD, OUT_PAD), jnp.float32).at[:H2, :F_OUT].set(w3)
    b3p = jnp.zeros((1, OUT_PAD), jnp.float32).at[:, :F_OUT].set(b3)
    return w1p, b1p, w2p, b2p, w3p, b3p


def netnorm_forward(x, gamma, beta, w1, b1, w2, b2, w3, b3, *,
                    tile_b=None, fused_max_rows=None):
    """Forward pass.  Batches up to `fused_max_rows` use the fused single-block
    kernel (one HBM read of x); larger batches use the gridded two-phase path
    (global stats kernel + batch-tiled matmul kernel).  Defaults are selected
    per TPU generation from the VMEM capacity."""
    B = x.shape[0]
    budget = _gen_budget()
    tile_b = budget["tile_b"] if tile_b is None else tile_b
    fused_max_rows = (budget["fused_max_rows"]
                      if fused_max_rows is None else fused_max_rows)
    vmem_limit = budget["vmem_limit"]
    cp_kwargs = {} if vmem_limit is None else {"vmem_limit_bytes": vmem_limit}

    w1p, b1p, w2p, b2p, w3p, b3p = _pad_params(w1, b1, w2, b2, w3, b3)

    # bf16 operands for every MXU matmul; halves the dominant x HBM stream.
    x_bf = x.astype(jnp.bfloat16)
    w2b, w3b = w2p.astype(jnp.bfloat16), w3p.astype(jnp.bfloat16)

    if B <= fused_max_rows:
        # ---- fused single-grid-point path ------------------------------------
        w1b = w1p.astype(jnp.bfloat16)
        vmem = pl.BlockSpec(memory_space=pltpu.MemorySpace.VMEM)
        flops = (2 * B * (F_IN * H_PAD + H_PAD * H_PAD + H_PAD * OUT_PAD)
                 + 8 * B * F_IN)
        bytes_acc = (2 * B * F_IN + 2 * (F_IN * H_PAD + 2 * H_PAD * H_PAD)
                     + 4 * (2 * F_IN + 3 * H_PAD) + 4 * B * OUT_PAD)
        out = pl.pallas_call(
            _netnorm_fused_kernel,
            out_shape=jax.ShapeDtypeStruct((B, OUT_PAD), jnp.float32),
            in_specs=[vmem] * 9,
            out_specs=vmem,
            compiler_params=pltpu.CompilerParams(**cp_kwargs),
            cost_estimate=pl.CostEstimate(
                flops=flops, transcendentals=F_IN, bytes_accessed=bytes_acc),
        )(x_bf, gamma, beta, w1b, b1p, w2b, b2p, w3b, b3p)
        return out[:, :F_OUT]

    # ---- gridded two-phase path ---------------------------------------------
    # Even number of batch tiles so the "parallel" axis splits evenly across
    # v7x's two TensorCores (harmless on single-TC v5e/v6e).
    n_pairs = pl.cdiv(B, 2 * tile_b)
    n_tiles = 2 * n_pairs
    b_pad = n_tiles * tile_b
    if b_pad != B:
        # Zero rows contribute 0 to sum/sumsq (stats divide by the true B) and
        # their outputs are sliced off below, so padding preserves semantics.
        x_bf = jnp.pad(x_bf, ((0, b_pad - B), (0, 0)))

    # Phase 1: global BN statistics accumulated across batch tiles (f32).
    # TODO(synk): on v7x this pass runs on one TensorCore; a 2-core split
    # (grid=(2, n_tiles//2) with per-core partial sums) would roughly halve it.
    sum8, sumsq8 = pl.pallas_call(
        _bn_stats_kernel,
        out_shape=(jax.ShapeDtypeStruct((8, F_IN), jnp.float32),
                   jax.ShapeDtypeStruct((8, F_IN), jnp.float32)),
        grid=(n_tiles,),
        in_specs=[pl.BlockSpec((tile_b, F_IN), lambda i: (i, 0))],
        out_specs=(pl.BlockSpec((8, F_IN), lambda i: (0, 0)),
                   pl.BlockSpec((8, F_IN), lambda i: (0, 0))),
        compiler_params=pltpu.CompilerParams(
            dimension_semantics=("arbitrary",), **cp_kwargs),
        cost_estimate=pl.CostEstimate(
            flops=4 * b_pad * F_IN, transcendentals=0,
            bytes_accessed=2 * b_pad * F_IN + 2 * 4 * 8 * F_IN),
    )(x_bf)
    sum_x = sum8[0:1, :]
    sumsq_x = sumsq8[0:1, :]

    # Fold BatchNorm (normalize + affine) into the first Linear, in f32, once
    # per call (fixed ~100K-element cost independent of B).  One-pass variance;
    # fine for normalized inputs (see fused path for the two-pass variant).
    mean = sum_x / B
    var = sumsq_x / B - mean * mean                  # biased variance, f32
    scale = gamma * jax.lax.rsqrt(var + BN_EPS)      # (1, 784)
    shift = beta - mean * scale                      # (1, 784)
    w1f = (w1p * scale.reshape(F_IN, 1)).astype(jnp.bfloat16)   # (784, 128)
    b1f = b1p + shift @ w1p                          # (1, 128) f32

    # Phase 2: batch-tiled matmul stack with VMEM-resident bf16 weights.
    flops = 2 * b_pad * (F_IN * H_PAD + H_PAD * H_PAD + H_PAD * OUT_PAD)
    bytes_acc = (2 * b_pad * F_IN + 2 * (F_IN * H_PAD + 2 * H_PAD * H_PAD)
                 + 4 * 3 * H_PAD + 4 * b_pad * OUT_PAD)
    out = pl.pallas_call(
        _netnorm_tile_kernel,
        out_shape=jax.ShapeDtypeStruct((b_pad, OUT_PAD), jnp.float32),
        grid=(n_tiles,),
        in_specs=[
            pl.BlockSpec((tile_b, F_IN), lambda i: (i, 0)),   # x tile (pipelined)
            pl.BlockSpec((F_IN, H_PAD), lambda i: (0, 0)),    # resident weights
            pl.BlockSpec((1, H_PAD), lambda i: (0, 0)),
            pl.BlockSpec((H_PAD, H_PAD), lambda i: (0, 0)),
            pl.BlockSpec((1, H_PAD), lambda i: (0, 0)),
            pl.BlockSpec((H_PAD, OUT_PAD), lambda i: (0, 0)),
            pl.BlockSpec((1, OUT_PAD), lambda i: (0, 0)),
        ],
        out_specs=pl.BlockSpec((tile_b, OUT_PAD), lambda i: (i, 0)),
        compiler_params=pltpu.CompilerParams(
            dimension_semantics=("parallel",), **cp_kwargs),  # v7x 2-TC sharding
        cost_estimate=pl.CostEstimate(
            flops=flops, transcendentals=0, bytes_accessed=bytes_acc),
    )(x_bf, w1f, b1f, w2b, b2p, w3b, b3p)
    return out[:B, :F_OUT]


def init_params(key):
    """Deterministic parameter init mirroring the PyTorch module's shapes.
    Linear weights are created as (out, in) (PyTorch convention) and
    transposed to (in, out) for the kernel."""
    ks = jax.random.split(key, 8)

    def linear(kw, kb, fan_in, fan_out):
        bound = 1.0 / jnp.sqrt(fan_in)
        w = jax.random.uniform(kw, (fan_out, fan_in), jnp.float32, -bound, bound)
        b = jax.random.uniform(kb, (fan_out,), jnp.float32, -bound, bound)
        return w.T, b.reshape(1, fan_out)            # (in, out), (1, out)

    # BatchNorm affine params (PyTorch default is gamma=1, beta=0; perturbed
    # deterministically so the affine path is actually exercised).
    gamma = 1.0 + 0.1 * jax.random.normal(ks[0], (1, F_IN), jnp.float32)
    beta = 0.1 * jax.random.normal(ks[1], (1, F_IN), jnp.float32)

    w1, b1 = linear(ks[2], ks[3], F_IN, H1)
    w2, b2 = linear(ks[4], ks[5], H1, H2)
    w3, b3 = linear(ks[6], ks[7], H2, F_OUT)
    return gamma, beta, w1, b1, w2, b2, w3, b3


def netnorm_reference(x, gamma, beta, w1, b1, w2, b2, w3, b3):
    """Pure-JAX f32 reference (two-pass stats) for correctness checking."""
    mean = jnp.mean(x, axis=0, keepdims=True)
    var = jnp.mean((x - mean) ** 2, axis=0, keepdims=True)
    x = (x - mean) / jnp.sqrt(var + BN_EPS) * gamma + beta
    x = jnp.maximum(x @ w1 + b1, 0.0)
    x = jnp.maximum(x @ w2 + b2, 0.0)
    x = jnp.maximum(x @ w3 + b3, 0.0)
    return x


# TODO(synk): BatchNorm1d running_mean/running_var buffer updates (training
# bookkeeping) are not modeled; they do not affect the forward output.

if __name__ == "__main__":
    key = jax.random.PRNGKey(0)
    k_x1, k_x2, k_p = jax.random.split(key, 3)
    params = init_params(k_p)

    # Small batch -> fused single-block kernel (bf16 MXU operands).
    b_small = 8
    x_small = jax.random.normal(k_x1, (b_small, F_IN), dtype=jnp.float32)
    out_small = jax.block_until_ready(netnorm_forward(x_small, *params))
    ref_small = netnorm_reference(x_small, *params)
    assert out_small.shape == (b_small, F_OUT), out_small.shape
    err_small = float(jnp.max(jnp.abs(out_small - ref_small)))
    assert err_small < 2e-2, err_small          # bf16-operand tolerance

    # Larger batch -> gridded two-phase path (4 batch tiles of 128 rows;
    # fused path disabled to exercise the stats + tiled-matmul kernels).
    b_big = 512
    x_big = jax.random.normal(k_x2, (b_big, F_IN), dtype=jnp.float32)
    out_big = jax.block_until_ready(
        netnorm_forward(x_big, *params, tile_b=128, fused_max_rows=0))
    ref_big = netnorm_reference(x_big, *params)
    assert out_big.shape == (b_big, F_OUT), out_big.shape
    err_big = float(jnp.max(jnp.abs(out_big - ref_big)))
    assert err_big < 2e-2, err_big              # bf16-operand tolerance

    print("KERNEL_OK")
</pallas_src>

<mosaic_0001>
module attributes {stable_mosaic.version = 11 : i64} {
  func.func @_netnorm_fused_kernel(%arg0: memref<8x784xbf16, #tpu.memory_space<vmem>>, %arg1: memref<1x784xf32, #tpu.memory_space<vmem>>, %arg2: memref<1x784xf32, #tpu.memory_space<vmem>>, %arg3: memref<784x128xbf16, #tpu.memory_space<vmem>>, %arg4: memref<1x128xf32, #tpu.memory_space<vmem>>, %arg5: memref<128x128xbf16, #tpu.memory_space<vmem>>, %arg6: memref<1x128xf32, #tpu.memory_space<vmem>>, %arg7: memref<128x128xbf16, #tpu.memory_space<vmem>>, %arg8: memref<1x128xf32, #tpu.memory_space<vmem>>, %arg9: memref<8x128xf32, #tpu.memory_space<vmem>>) attributes {dimension_semantics = [], scalar_prefetch = 0 : i64, scratch_operands = 0 : i64, tpu.core_type = #tpu.core_type<tc>} {
    %c0 = arith.constant 0 : index
    %c0_0 = arith.constant 0 : index
    %0 = vector.load %arg0[%c0, %c0_0] : memref<8x784xbf16, #tpu.memory_space<vmem>>, vector<8x784xbf16>
    %1 = arith.extf %0 : vector<8x784xbf16> to vector<8x784xf32>
    %cst = arith.constant dense<0.000000e+00> : vector<784xf32>
    %2 = vector.multi_reduction <add>, %1, %cst [0] : vector<8x784xf32> to vector<784xf32>
    %3 = vector.shape_cast %2 : vector<784xf32> to vector<1x784xf32>
    %cst_1 = arith.constant 1.250000e-01 : f32
    %4 = vector.broadcast %cst_1 : f32 to vector<1x784xf32>
    %5 = arith.mulf %3, %4 : vector<1x784xf32>
    %6 = vector.broadcast %5 : vector<1x784xf32> to vector<8x784xf32>
    %7 = arith.subf %1, %6 : vector<8x784xf32>
    %8 = arith.mulf %7, %7 : vector<8x784xf32>
    %cst_2 = arith.constant dense<0.000000e+00> : vector<784xf32>
    %9 = vector.multi_reduction <add>, %8, %cst_2 [0] : vector<8x784xf32> to vector<784xf32>
    %10 = vector.shape_cast %9 : vector<784xf32> to vector<1x784xf32>
    %cst_3 = arith.constant 1.250000e-01 : f32
    %11 = vector.broadcast %cst_3 : f32 to vector<1x784xf32>
    %12 = arith.mulf %10, %11 : vector<1x784xf32>
    %c0_4 = arith.constant 0 : index
    %c0_5 = arith.constant 0 : index
    %13 = vector.load %arg1[%c0_4, %c0_5] : memref<1x784xf32, #tpu.memory_space<vmem>>, vector<1x784xf32>
    %cst_6 = arith.constant 9.99999974E-6 : f32
    %14 = vector.broadcast %cst_6 : f32 to vector<1x784xf32>
    %15 = arith.addf %12, %14 : vector<1x784xf32>
    %16 = math.rsqrt %15 : vector<1x784xf32>
    %17 = arith.mulf %13, %16 : vector<1x784xf32>
    %c0_7 = arith.constant 0 : index
    %c0_8 = arith.constant 0 : index
    %18 = vector.load %arg2[%c0_7, %c0_8] : memref<1x784xf32, #tpu.memory_space<vmem>>, vector<1x784xf32>
    %19 = arith.mulf %5, %17 : vector<1x784xf32>
    %20 = arith.subf %18, %19 : vector<1x784xf32>
    %21 = arith.truncf %17 : vector<1x784xf32> to vector<1x784xbf16>
    %22 = vector.broadcast %21 : vector<1x784xbf16> to vector<8x784xbf16>
    %23 = arith.mulf %0, %22 : vector<8x784xbf16>
    %24 = arith.truncf %20 : vector<1x784xf32> to vector<1x784xbf16>
    %25 = vector.broadcast %24 : vector<1x784xbf16> to vector<8x784xbf16>
    %26 = arith.addf %23, %25 : vector<8x784xbf16>
    %c0_9 = arith.constant 0 : index
    %c0_10 = arith.constant 0 : index
    %27 = vector.load %arg3[%c0_9, %c0_10] : memref<784x128xbf16, #tpu.memory_space<vmem>>, vector<784x128xbf16>
    %cst_11 = arith.constant dense<0.000000e+00> : vector<8x128xf32>
    %28 = tpu.matmul %26, %27, %cst_11 {dimension_numbers = #tpu.dot_dimension_numbers<[1], [0], [0], [1], [0, 0, 1, 1], [], []>} : vector<8x784xbf16>, vector<784x128xbf16>, vector<8x128xf32> -> vector<8x128xf32>
    %c0_12 = arith.constant 0 : index
    %c0_13 = arith.constant 0 : index
    %29 = vector.load %arg4[%c0_12, %c0_13] : memref<1x128xf32, #tpu.memory_space<vmem>>, vector<1x128xf32>
    %30 = vector.broadcast %29 : vector<1x128xf32> to vector<8x128xf32>
    %31 = arith.addf %28, %30 : vector<8x128xf32>
    %cst_14 = arith.constant 0.000000e+00 : f32
    %32 = vector.broadcast %cst_14 : f32 to vector<8x128xf32>
    %33 = arith.maximumf %31, %32 : vector<8x128xf32>
    %34 = arith.truncf %33 : vector<8x128xf32> to vector<8x128xbf16>
    %c0_15 = arith.constant 0 : index
    %c0_16 = arith.constant 0 : index
    %35 = vector.load %arg5[%c0_15, %c0_16] : memref<128x128xbf16, #tpu.memory_space<vmem>>, vector<128x128xbf16>
    %cst_17 = arith.constant dense<0.000000e+00> : vector<8x128xf32>
    %36 = tpu.matmul %34, %35, %cst_17 {dimension_numbers = #tpu.dot_dimension_numbers<[1], [0], [0], [1], [0, 0, 1, 1], [], []>} : vector<8x128xbf16>, vector<128x128xbf16>, vector<8x128xf32> -> vector<8x128xf32>
    %c0_18 = arith.constant 0 : index
    %c0_19 = arith.constant 0 : index
    %37 = vector.load %arg6[%c0_18, %c0_19] : memref<1x128xf32, #tpu.memory_space<vmem>>, vector<1x128xf32>
    %38 = vector.broadcast %37 : vector<1x128xf32> to vector<8x128xf32>
    %39 = arith.addf %36, %38 : vector<8x128xf32>
    %cst_20 = arith.constant 0.000000e+00 : f32
    %40 = vector.broadcast %cst_20 : f32 to vector<8x128xf32>
    %41 = arith.maximumf %39, %40 : vector<8x128xf32>
    %42 = arith.truncf %41 : vector<8x128xf32> to vector<8x128xbf16>
    %c0_21 = arith.constant 0 : index
    %c0_22 = arith.constant 0 : index
    %43 = vector.load %arg7[%c0_21, %c0_22] : memref<128x128xbf16, #tpu.memory_space<vmem>>, vector<128x128xbf16>
    %cst_23 = arith.constant dense<0.000000e+00> : vector<8x128xf32>
    %44 = tpu.matmul %42, %43, %cst_23 {dimension_numbers = #tpu.dot_dimension_numbers<[1], [0], [0], [1], [0, 0, 1, 1], [], []>} : vector<8x128xbf16>, vector<128x128xbf16>, vector<8x128xf32> -> vector<8x128xf32>
    %c0_24 = arith.constant 0 : index
    %c0_25 = arith.constant 0 : index
    %45 = vector.load %arg8[%c0_24, %c0_25] : memref<1x128xf32, #tpu.memory_space<vmem>>, vector<1x128xf32>
    %46 = vector.broadcast %45 : vector<1x128xf32> to vector<8x128xf32>
    %47 = arith.addf %44, %46 : vector<8x128xf32>
    %cst_26 = arith.constant 0.000000e+00 : f32
    %48 = vector.broadcast %cst_26 : f32 to vector<8x128xf32>
    %49 = arith.maximumf %47, %48 : vector<8x128xf32>
    %c0_27 = arith.constant 0 : index
    %c0_28 = arith.constant 0 : index
    %50 = vector.load %arg9[%c0_27, %c0_28] : memref<8x128xf32, #tpu.memory_space<vmem>>, vector<8x128xf32>
    tpu.vector_store %arg9[%c0_27, %c0_28], %49 {strides = array<i32>} : memref<8x128xf32, #tpu.memory_space<vmem>>, vector<8x128xf32>,
    return
  }
}

</mosaic_0001>

<llo_original>
// kernel: tpu_custom_call.1
$region0: #{tpu_custom_call.1}
  #allocation0 [shape = 'u32[]', space=smem, size = 0x4, offset = 0x4, fixed_abs, tag = 'smem constant byte address 0x4 - core index']
  #allocation1 [shape = 'u32[144,128]{1,0:T(1,128)}', space=vmem, size = 0x12000, scoped, tag = 'internal scratch']
  %s0 = inlined_call_operand.hbm [shape: bf16[8,784], index: 0, kind: input, shape index: {}]
  %s1 = inlined_call_operand.hbm [shape: f32[1,784], index: 1, kind: input, shape index: {}]
  %s2 = inlined_call_operand.vmem [shape: f32[1,784], index: 2, kind: input, shape index: {}]
  %s3 = inlined_call_operand.hbm [shape: bf16[784,128], index: 3, kind: input, shape index: {}]
  %s4 = inlined_call_operand.vmem [shape: f32[1,128], index: 4, kind: input, shape index: {}]
  %s5 = inlined_call_operand.hbm [shape: bf16[128,128], index: 5, kind: input, shape index: {}]
  %s6 = inlined_call_operand.vmem [shape: f32[1,128], index: 6, kind: input, shape index: {}]
  %s7 = inlined_call_operand.hbm [shape: bf16[128,128], index: 7, kind: input, shape index: {}]
  %s8 = inlined_call_operand.vmem [shape: f32[1,128], index: 8, kind: input, shape index: {}]
  %s9 = inlined_call_operand.hbm [shape: f32[8,128], index: 9, kind: output, shape index: {}]
  %s10 = sld [smem:[#allocation0]]
  $region66: #{tpu_custom_call.1} parent=0
    _
  %s12 = ssub.s32 1, %s10
  %s13 = scalar_select 0, %s12, %s10
  $region1: #{tpu_custom_call.1} parent=0
    #allocation2 [shape = 'u8[14336]{0}', space=vmem, size = 0x3800, scoped, tag = 'input window, operand 0, single buffered']
    #allocation3 [shape = 's32[1]{0}', space=sflag, size = 0x4, scoped, tag = 'scoped memory for tpu_custom_call.1']
    #allocation4 [shape = 's32[1]{0}', space=sflag, size = 0x4, scoped, tag = 'scoped memory for tpu_custom_call.1']
    #allocation5 [shape = 'u8[3584]{0}', space=vmem, size = 0x1000, scoped, tag = 'input window, operand 1, single buffered']
    #allocation6 [shape = 's32[1]{0}', space=sflag, size = 0x4, scoped, tag = 'scoped memory for tpu_custom_call.1']
    #allocation7 [shape = 'u8[200704]{0}', space=vmem, size = 0x31000, scoped, tag = 'input window, operand 3, single buffered']
    #allocation8 [shape = 'u8[32768]{0}', space=vmem, size = 0x8000, scoped, tag = 'input window, operand 5, single buffered']
    #allocation9 [shape = 's32[1]{0}', space=sflag, size = 0x4, scoped, tag = 'scoped memory for tpu_custom_call.1']
    #allocation10 [shape = 'u8[32768]{0}', space=vmem, size = 0x8000, scoped, tag = 'input window, operand 7, single buffered']
    #allocation11 [shape = 'u8[4096]{0}', space=vmem, size = 0x1000, scoped, tag = 'output window, operand 0, single buffered']
    %14 = vsyncpa [#allocation3], 0
    %15 = vsyncpa [#allocation6], 0
    %16 = vsyncpa [#allocation9], 0
    %17 = vsyncpa [#allocation4], 0
    // Predicated region
    $region2: #{tpu_custom_call.1} parent=1 // pred_check
      _
    $region3: #{tpu_custom_call.1} parent=1 // pred_check_branch
      %19 = sbr.rel (0) target = $region5
    $region4: #{tpu_custom_call.1} parent=1 // pred_region
      %s21 = ssub.s32 448, 448
      %22 = vsyncadd [#allocation3], %s21
      %s24 = sshll.u32 [#allocation2], 4
      %s25 = int_to_ptr.vmem [resolvable:$true] %s24
      %27 = dma.hbm_to_vmem [thread:$0]  %s0, 448, %s25, [#allocation3]
    $region5: #{tpu_custom_call.1} parent=1 // pred_fallthru
      _
    // Predicated region
    $region6: #{tpu_custom_call.1} parent=1 // pred_check
      _
    $region7: #{tpu_custom_call.1} parent=1 // pred_check_branch
      %29 = sbr.rel (0) target = $region9
    $region8: #{tpu_custom_call.1} parent=1 // pred_region
      %s31 = ssub.s32 112, 112
      %32 = vsyncadd [#allocation6], %s31
      %s34 = sshll.u32 [#allocation5], 4
      %s35 = int_to_ptr.vmem [resolvable:$true] %s34
      %37 = dma.hbm_to_vmem [thread:$0]  %s1, 112, %s35, [#allocation6]
    $region9: #{tpu_custom_call.1} parent=1 // pred_fallthru
      _
    // Predicated region
    $region10: #{tpu_custom_call.1} parent=1 // pred_check
      _
    $region11: #{tpu_custom_call.1} parent=1 // pred_check_branch
      %39 = sbr.rel (0) target = $region13
    $region12: #{tpu_custom_call.1} parent=1 // pred_region
      _
    $region13: #{tpu_custom_call.1} parent=1 // pred_fallthru
      _
    // Predicated region
    $region14: #{tpu_custom_call.1} parent=1 // pred_check
      _
    $region15: #{tpu_custom_call.1} parent=1 // pred_check_branch
      %41 = sbr.rel (0) target = $region17
    $region16: #{tpu_custom_call.1} parent=1 // pred_region
      %s43 = ssub.s32 6272, 6272
      %44 = vsyncadd [#allocation6], %s43
      %s45 = sshll.u32 [#allocation7], 4
      %s46 = int_to_ptr.vmem [resolvable:$true] %s45
      %51 = dma.hbm_to_vmem [thread:$0]  %s3, 6272, %s46, [#allocation6], 64, 64, 4
    $region17: #{tpu_custom_call.1} parent=1 // pred_fallthru
      _
    // Predicated region
    $region18: #{tpu_custom_call.1} parent=1 // pred_check
      _
    $region19: #{tpu_custom_call.1} parent=1 // pred_check_branch
      %53 = sbr.rel (0) target = $region21
    $region20: #{tpu_custom_call.1} parent=1 // pred_region
      _
    $region21: #{tpu_custom_call.1} parent=1 // pred_fallthru
      _
    // Predicated region
    $region22: #{tpu_custom_call.1} parent=1 // pred_check
      _
    $region23: #{tpu_custom_call.1} parent=1 // pred_check_branch
      %55 = sbr.rel (0) target = $region25
    $region24: #{tpu_custom_call.1} parent=1 // pred_region
      %s57 = ssub.s32 1024, 1024
      %58 = vsyncadd [#allocation9], %s57
      %s59 = sshll.u32 [#allocation8], 4
      %s60 = int_to_ptr.vmem [resolvable:$true] %s59
      %65 = dma.hbm_to_vmem [thread:$0]  %s5, 1024, %s60, [#allocation9], 64, 64, 4
    $region25: #{tpu_custom_call.1} parent=1 // pred_fallthru
      _
    // Predicated region
    $region26: #{tpu_custom_call.1} parent=1 // pred_check
      _
    $region27: #{tpu_custom_call.1} parent=1 // pred_check_branch
      %67 = sbr.rel (0) target = $region29
    $region28: #{tpu_custom_call.1} parent=1 // pred_region
      _
    $region29: #{tpu_custom_call.1} parent=1 // pred_fallthru
      _
    // Predicated region
    $region30: #{tpu_custom_call.1} parent=1 // pred_check
      _
    $region31: #{tpu_custom_call.1} parent=1 // pred_check_branch
      %69 = sbr.rel (0) target = $region33
    $region32: #{tpu_custom_call.1} parent=1 // pred_region
      %s71 = ssub.s32 1024, 1024
      %72 = vsyncadd [#allocation9], %s71
      %s73 = sshll.u32 [#allocation10], 4
      %s74 = int_to_ptr.vmem [resolvable:$true] %s73
      %79 = dma.hbm_to_vmem [thread:$0]  %s7, 1024, %s74, [#allocation9], 64, 64, 4
    $region33: #{tpu_custom_call.1} parent=1 // pred_fallthru
      _
    // Predicated region
    $region34: #{tpu_custom_call.1} parent=1 // pred_check
      _
    $region35: #{tpu_custom_call.1} parent=1 // pred_check_branch
      %81 = sbr.rel (0) target = $region37
    $region36: #{tpu_custom_call.1} parent=1 // pred_region
      _
    $region37: #{tpu_custom_call.1} parent=1 // pred_fallthru
      _
    // Predicated region
    $region38: #{tpu_custom_call.1} parent=1 // pred_check
      _
    $region39: #{tpu_custom_call.1} parent=1 // pred_check_branch
      %83 = sbr.rel (0) target = $region41
    $region40: #{tpu_custom_call.1} parent=1 // pred_region
      %84 = dma.done [#allocation3], 448
    $region41: #{tpu_custom_call.1} parent=1 // pred_fallthru
      _
    // Predicated region
    $region42: #{tpu_custom_call.1} parent=1 // pred_check
      _
    $region43: #{tpu_custom_call.1} parent=1 // pred_check_branch
      %86 = sbr.rel (0) target = $region45
    $region44: #{tpu_custom_call.1} parent=1 // pred_region
      %87 = dma.done [#allocation6], 112
    $region45: #{tpu_custom_call.1} parent=1 // pred_fallthru
      _
    // Predicated region
    $region46: #{tpu_custom_call.1} parent=1 // pred_check
      _
    $region47: #{tpu_custom_call.1} parent=1 // pred_check_branch
      %89 = sbr.rel (0) target = $region49
    $region48: #{tpu_custom_call.1} parent=1 // pred_region
      %90 = dma.done [#allocation6], 6272
    $region49: #{tpu_custom_call.1} parent=1 // pred_fallthru
      _
    // Predicated region
    $region50: #{tpu_custom_call.1} parent=1 // pred_check
      _
    $region51: #{tpu_custom_call.1} parent=1 // pred_check_branch
      %92 = sbr.rel (0) target = $region53
    $region52: #{tpu_custom_call.1} parent=1 // pred_region
      %93 = dma.done [#allocation9], 1024
    $region53: #{tpu_custom_call.1} parent=1 // pred_fallthru
      _
    // Predicated region
    $region54: #{tpu_custom_call.1} parent=1 // pred_check
      _
    $region55: #{tpu_custom_call.1} parent=1 // pred_check_branch
      %95 = sbr.rel (0) target = $region57
    $region56: #{tpu_custom_call.1} parent=1 // pred_region
      %96 = dma.done [#allocation9], 1024
    $region57: #{tpu_custom_call.1} parent=1 // pred_fallthru
      _
    %v98 = vld [vmem:[#allocation2] sm:$0xff]
    %v99 = vld [vmem:[#allocation2 + $0x8] sm:$0xff]
    %v100 = vld [vmem:[#allocation2 + $0x10] sm:$0xff]
    %v101 = vld [vmem:[#allocation2 + $0x18] sm:$0xf]
    %v102 = vunpack.c.l.bf16 %v98
    %v103 = vunpack.c.h.bf16 %v98
    %v104 = vunpack.c.l.bf16 %v99
    %v105 = vunpack.c.h.bf16 %v99
    %v106 = vunpack.c.l.bf16 %v100
    %v107 = vunpack.c.h.bf16 %v100
    %v108 = vunpack.c.l.bf16 %v101
    %v109 = vrot.slane %v102, 4
    %v110 = vadd.f32 %v102, %v109
    %v111 = vrot.slane %v110, 2
    %v112 = vadd.f32 %v110, %v111
    %v113 = vrot.slane %v112, 1
    %v114 = vadd.f32 %v112, %v113
    %v115 = vrot.slane %v103, 4
    %v116 = vadd.f32 %v103, %v115
    %v117 = vrot.slane %v116, 2
    %v118 = vadd.f32 %v116, %v117
    %v119 = vrot.slane %v118, 1
    %v120 = vadd.f32 %v118, %v119
    %v121 = vrot.slane %v104, 4
    %v122 = vadd.f32 %v104, %v121
    %v123 = vrot.slane %v122, 2
    %v124 = vadd.f32 %v122, %v123
    %v125 = vrot.slane %v124, 1
    %v126 = vadd.f32 %v124, %v125
    %v127 = vrot.slane %v105, 4
    %v128 = vadd.f32 %v105, %v127
    %v129 = vrot.slane %v128, 2
    %v130 = vadd.f32 %v128, %v129
    %v131 = vrot.slane %v130, 1
    %v132 = vadd.f32 %v130, %v131
    %v133 = vrot.slane %v106, 4
    %v134 = vadd.f32 %v106, %v133
    %v135 = vrot.slane %v134, 2
    %v136 = vadd.f32 %v134, %v135
    %v137 = vrot.slane %v136, 1
    %v138 = vadd.f32 %v136, %v137
    %v139 = vrot.slane %v107, 4
    %v140 = vadd.f32 %v107, %v139
    %v141 = vrot.slane %v140, 2
    %v142 = vadd.f32 %v140, %v141
    %v143 = vrot.slane %v142, 1
    %v144 = vadd.f32 %v142, %v143
    %vm145 = vcmask 130048
    %v146 = vsel %vm145, %v108, 0.0
    %v147 = vrot.slane %v146, 4
    %v148 = vadd.f32 %v146, %v147
    %v149 = vrot.slane %v148, 2
    %v150 = vadd.f32 %v148, %v149
    %v151 = vrot.slane %v150, 1
    %v152 = vadd.f32 %v150, %v151
    %v153 = vmul.f32 %v114, 0.125
    %v154 = vmul.f32 %v120, 0.125
    %v155 = vmul.f32 %v126, 0.125
    %v156 = vmul.f32 %v132, 0.125
    %v157 = vmul.f32 %v138, 0.125
    %v158 = vmul.f32 %v144, 0.125
    %v159 = vmul.f32 %v152, 0.125
    %v160 = vsub.f32 %v102, %v153
    %v161 = vsub.f32 %v103, %v154
    %v162 = vsub.f32 %v104, %v155
    %v163 = vsub.f32 %v105, %v156
    %v164 = vsub.f32 %v106, %v157
    %v165 = vsub.f32 %v107, %v158
    %v166 = vsub.f32 %v108, %v159
    %v167 = vmul.f32 %v160, %v160
    %v168 = vmul.f32 %v161, %v161
    %v169 = vmul.f32 %v162, %v162
    %v170 = vmul.f32 %v163, %v163
    %v171 = vmul.f32 %v164, %v164
    %v172 = vmul.f32 %v165, %v165
    %v173 = vmul.f32 %v166, %v166
    %v174 = vrot.slane %v167, 4
    %v175 = vadd.f32 %v167, %v174
    %v176 = vrot.slane %v175, 2
    %v177 = vadd.f32 %v175, %v176
    %v178 = vrot.slane %v177, 1
    %v179 = vadd.f32 %v177, %v178
    %v180 = vrot.slane %v168, 4
    %v181 = vadd.f32 %v168, %v180
    %v182 = vrot.slane %v181, 2
    %v183 = vadd.f32 %v181, %v182
    %v184 = vrot.slane %v183, 1
    %v185 = vadd.f32 %v183, %v184
    %v186 = vrot.slane %v169, 4
    %v187 = vadd.f32 %v169, %v186
    %v188 = vrot.slane %v187, 2
    %v189 = vadd.f32 %v187, %v188
    %v190 = vrot.slane %v189, 1
    %v191 = vadd.f32 %v189, %v190
    %v192 = vrot.slane %v170, 4
    %v193 = vadd.f32 %v170, %v192
    %v194 = vrot.slane %v193, 2
    %v195 = vadd.f32 %v193, %v194
    %v196 = vrot.slane %v195, 1
    %v197 = vadd.f32 %v195, %v196
    %v198 = vrot.slane %v171, 4
    %v199 = vadd.f32 %v171, %v198
    %v200 = vrot.slane %v199, 2
    %v201 = vadd.f32 %v199, %v200
    %v202 = vrot.slane %v201, 1
    %v203 = vadd.f32 %v201, %v202
    %v204 = vrot.slane %v172, 4
    %v205 = vadd.f32 %v172, %v204
    %v206 = vrot.slane %v205, 2
    %v207 = vadd.f32 %v205, %v206
    %v208 = vrot.slane %v207, 1
    %v209 = vadd.f32 %v207, %v208
    %v210 = vsel %vm145, %v173, 0.0
    %v211 = vrot.slane %v210, 4
    %v212 = vadd.f32 %v210, %v211
    %v213 = vrot.slane %v212, 2
    %v214 = vadd.f32 %v212, %v213
    %v215 = vrot.slane %v214, 1
    %v216 = vadd.f32 %v214, %v215
    %v217 = vmul.f32 %v179, 0.125
    %v218 = vmul.f32 %v185, 0.125
    %v219 = vmul.f32 %v191, 0.125
    %v220 = vmul.f32 %v197, 0.125
    %v221 = vmul.f32 %v203, 0.125
    %v222 = vmul.f32 %v209, 0.125
    %v223 = vmul.f32 %v216, 0.125
    %v224 = vld [vmem:[#allocation5] sm:$0x7f]
    %v225 = vadd.f32 %v217, 1e-05
    %v226 = vadd.f32 %v218, 1e-05
    %v227 = vadd.f32 %v219, 1e-05
    %v228 = vadd.f32 %v220, 1e-05
    %v229 = vadd.f32 %v221, 1e-05
    %v230 = vadd.f32 %v222, 1e-05
    %v231 = vadd.f32 %v223, 1e-05
    %v232 = vrsqrt.pop %v225
    %v233 = vrsqrt.pop %v226
    %v234 = vrsqrt.pop %v227
    %v235 = vrsqrt.pop %v228
    %v236 = vrsqrt.pop %v229
    %v237 = vrsqrt.pop %v230
    %v238 = vrsqrt.pop %v231
    %v246 = vcombine.low %v232, %v233
    %v247 = vcombine.low %v234, %v235
    %v248 = vcombine.low %v236, %v237
    %v250 = vunpack.c.l.s4 1966171168
    %v251 = vunpack.c.0.s8 %v250
    %v252 = vlaneseq
    %v253 = vshrl.u32 %v252, 7
    %v254 = vsub.s32 %v251, %v253
    %v255 = vrot.slane %v246, %v254
    %v257 = vunpack.c.l.s4 1966171168
    %v258 = vunpack.c.0.s8 %v257
    %v259 = vlaneseq
    %v260 = vshrl.u32 %v259, 7
    %v261 = vsub.s32 %v258, %v260
    %v262 = vrot.slane %v247, %v261
    %v264 = vunpack.c.l.s4 1966171168
    %v265 = vunpack.c.0.s8 %v264
    %v266 = vlaneseq
    %v267 = vshrl.u32 %v266, 7
    %v268 = vsub.s32 %v265, %v267
    %v269 = vrot.slane %v248, %v268
    %v271 = vunpack.c.l.s4 1966171168
    %v272 = vunpack.c.0.s8 %v271
    %v273 = vlaneseq
    %v274 = vshrl.u32 %v273, 7
    %v275 = vsub.s32 %v272, %v274
    %v276 = vrot.slane %v238, %v275
    %v277 = vcombine.low %v255, %v262
    %v278 = vcombine.low %v269, %v276
    %v280 = vunpack.c.l.s4 1966171168
    %v281 = vunpack.c.0.s8 %v280
    %v282 = vlaneseq
    %v283 = vshrl.u32 %v282, 7
    %v284 = vsub.s32 %v281, %v283
    %v285 = vrot.slane %v277, %v284
    %v287 = vunpack.c.l.s4 1966171168
    %v288 = vunpack.c.0.s8 %v287
    %v289 = vlaneseq
    %v290 = vshrl.u32 %v289, 7
    %v291 = vsub.s32 %v288, %v290
    %v292 = vrot.slane %v278, %v291
    %v293 = vcombine.low %v285, %v292
    %v295 = vmul.f32 %v224, %v293
    %v296 = vld [vmem:[%s2] sm:$0x7f]
    %v298 = vlaneseq
    %v299 = vshrl.u32 %v298, 7
    %v300 = vsub.s32 0, %v299
    %v301 = vrot.slane %v295, %v300
    %v302 = vlaneseq
    %v303 = vshrl.u32 %v302, 7
    %v304 = vsub.s32 1, %v303
    %v305 = vrot.slane %v295, %v304
    %v306 = vlaneseq
    %v307 = vshrl.u32 %v306, 7
    %v308 = vsub.s32 2, %v307
    %v309 = vrot.slane %v295, %v308
    %v310 = vlaneseq
    %v311 = vshrl.u32 %v310, 7
    %v312 = vsub.s32 3, %v311
    %v313 = vrot.slane %v295, %v312
    %v314 = vlaneseq
    %v315 = vshrl.u32 %v314, 7
    %v316 = vsub.s32 4, %v315
    %v317 = vrot.slane %v295, %v316
    %v318 = vlaneseq
    %v319 = vshrl.u32 %v318, 7
    %v320 = vsub.s32 5, %v319
    %v321 = vrot.slane %v295, %v320
    %v322 = vlaneseq
    %v323 = vshrl.u32 %v322, 7
    %v324 = vsub.s32 6, %v323
    %v325 = vrot.slane %v295, %v324
    %v333 = vmul.f32 %v153, %v301
    %v334 = vmul.f32 %v154, %v305
    %v335 = vmul.f32 %v155, %v309
    %v336 = vmul.f32 %v156, %v313
    %v337 = vmul.f32 %v157, %v317
    %v338 = vmul.f32 %v158, %v321
    %v339 = vmul.f32 %v159, %v325
    %v347 = vcombine.low %v333, %v334
    %v348 = vcombine.low %v335, %v336
    %v349 = vcombine.low %v337, %v338
    %v351 = vunpack.c.l.s4 1966171168
    %v352 = vunpack.c.0.s8 %v351
    %v353 = vlaneseq
    %v354 = vshrl.u32 %v353, 7
    %v355 = vsub.s32 %v352, %v354
    %v356 = vrot.slane %v347, %v355
    %v358 = vunpack.c.l.s4 1966171168
    %v359 = vunpack.c.0.s8 %v358
    %v360 = vlaneseq
    %v361 = vshrl.u32 %v360, 7
    %v362 = vsub.s32 %v359, %v361
    %v363 = vrot.slane %v348, %v362
    %v365 = vunpack.c.l.s4 1966171168
    %v366 = vunpack.c.0.s8 %v365
    %v367 = vlaneseq
    %v368 = vshrl.u32 %v367, 7
    %v369 = vsub.s32 %v366, %v368
    %v370 = vrot.slane %v349, %v369
    %v372 = vunpack.c.l.s4 1966171168
    %v373 = vunpack.c.0.s8 %v372
    %v374 = vlaneseq
    %v375 = vshrl.u32 %v374, 7
    %v376 = vsub.s32 %v373, %v375
    %v377 = vrot.slane %v339, %v376
    %v378 = vcombine.low %v356, %v363
    %v379 = vcombine.low %v370, %v377
    %v381 = vunpack.c.l.s4 1966171168
    %v382 = vunpack.c.0.s8 %v381
    %v383 = vlaneseq
    %v384 = vshrl.u32 %v383, 7
    %v385 = vsub.s32 %v382, %v384
    %v386 = vrot.slane %v378, %v385
    %v388 = vunpack.c.l.s4 1966171168
    %v389 = vunpack.c.0.s8 %v388
    %v390 = vlaneseq
    %v391 = vshrl.u32 %v390, 7
    %v392 = vsub.s32 %v389, %v391
    %v393 = vrot.slane %v379, %v392
    %v394 = vcombine.low %v386, %v393
    %v396 = vsub.f32 %v296, %v394
    %v397 = vpack.c.bf16 %v301, %v301
    %v398 = vpack.c.bf16 %v305, %v305
    %v399 = vpack.c.bf16 %v309, %v309
    %v400 = vpack.c.bf16 %v313, %v313
    %v401 = vpack.c.bf16 %v317, %v317
    %v402 = vpack.c.bf16 %v321, %v321
    %v403 = vpack.c.bf16 %v325, %v325
    %v405 = vpack.i.b16 %v397, %v397
    %v407 = vlaneseq
    %v408 = vshrl.u32 %v407, 7
    %v409 = vsub.s32 0, %v408
    %v410 = vrot.slane %v405, %v409
    %v412 = vpack.i.b16 %v398, %v398
    %v414 = vlaneseq
    %v415 = vshrl.u32 %v414, 7
    %v416 = vsub.s32 0, %v415
    %v417 = vrot.slane %v412, %v416
    %v419 = vpack.i.b16 %v399, %v399
    %v421 = vlaneseq
    %v422 = vshrl.u32 %v421, 7
    %v423 = vsub.s32 0, %v422
    %v424 = vrot.slane %v419, %v423
    %v426 = vpack.i.b16 %v400, %v400
    %v428 = vlaneseq
    %v429 = vshrl.u32 %v428, 7
    %v430 = vsub.s32 0, %v429
    %v431 = vrot.slane %v426, %v430
    %v433 = vpack.i.b16 %v401, %v401
    %v435 = vlaneseq
    %v436 = vshrl.u32 %v435, 7
    %v437 = vsub.s32 0, %v436
    %v438 = vrot.slane %v433, %v437
    %v440 = vpack.i.b16 %v402, %v402
    %v442 = vlaneseq
    %v443 = vshrl.u32 %v442, 7
    %v444 = vsub.s32 0, %v443
    %v445 = vrot.slane %v440, %v444
    %v447 = vpack.i.b16 %v403, %v403
    %v449 = vlaneseq
    %v450 = vshrl.u32 %v449, 7
    %v451 = vsub.s32 0, %v450
    %v452 = vrot.slane %v447, %v451
    %v460 = vunpack.c.l.b16 %v410
    %v461 = vunpack.c.l.b16 %v417
    %v462 = vunpack.c.l.b16 %v424
    %v463 = vunpack.c.l.b16 %v431
    %v464 = vunpack.c.l.b16 %v438
    %v465 = vunpack.c.l.b16 %v445
    %v466 = vunpack.c.l.b16 %v452
    %v467 = vpack.c.b16 %v461, %v460
    %v468 = vpack.c.b16 %v463, %v462
    %v469 = vpack.c.b16 %v465, %v464
    %v470 = vpack.c.b16 %v466, %v466
    %v475 = vmul.bf16 %v98, %v467
    %v476 = vmul.bf16 %v99, %v468
    %v477 = vmul.bf16 %v100, %v469
    %v478 = vmul.bf16 %v101, %v470
    %v480 = vlaneseq
    %v481 = vshrl.u32 %v480, 7
    %v482 = vsub.s32 0, %v481
    %v483 = vrot.slane %v396, %v482
    %v484 = vlaneseq
    %v485 = vshrl.u32 %v484, 7
    %v486 = vsub.s32 1, %v485
    %v487 = vrot.slane %v396, %v486
    %v488 = vlaneseq
    %v489 = vshrl.u32 %v488, 7
    %v490 = vsub.s32 2, %v489
    %v491 = vrot.slane %v396, %v490
    %v492 = vlaneseq
    %v493 = vshrl.u32 %v492, 7
    %v494 = vsub.s32 3, %v493
    %v495 = vrot.slane %v396, %v494
    %v496 = vlaneseq
    %v497 = vshrl.u32 %v496, 7
    %v498 = vsub.s32 4, %v497
    %v499 = vrot.slane %v396, %v498
    %v500 = vlaneseq
    %v501 = vshrl.u32 %v500, 7
    %v502 = vsub.s32 5, %v501
    %v503 = vrot.slane %v396, %v502
    %v504 = vlaneseq
    %v505 = vshrl.u32 %v504, 7
    %v506 = vsub.s32 6, %v505
    %v507 = vrot.slane %v396, %v506
    %v515 = vpack.c.bf16 %v483, %v483
    %v516 = vpack.c.bf16 %v487, %v487
    %v517 = vpack.c.bf16 %v491, %v491
    %v518 = vpack.c.bf16 %v495, %v495
    %v519 = vpack.c.bf16 %v499, %v499
    %v520 = vpack.c.bf16 %v503, %v503
    %v521 = vpack.c.bf16 %v507, %v507
    %v523 = vpack.i.b16 %v515, %v515
    %v525 = vlaneseq
    %v526 = vshrl.u32 %v525, 7
    %v527 = vsub.s32 0, %v526
    %v528 = vrot.slane %v523, %v527
    %v530 = vpack.i.b16 %v516, %v516
    %v532 = vlaneseq
    %v533 = vshrl.u32 %v532, 7
    %v534 = vsub.s32 0, %v533
    %v535 = vrot.slane %v530, %v534
    %v537 = vpack.i.b16 %v517, %v517
    %v539 = vlaneseq
    %v540 = vshrl.u32 %v539, 7
    %v541 = vsub.s32 0, %v540
    %v542 = vrot.slane %v537, %v541
    %v544 = vpack.i.b16 %v518, %v518
    %v546 = vlaneseq
    %v547 = vshrl.u32 %v546, 7
    %v548 = vsub.s32 0, %v547
    %v549 = vrot.slane %v544, %v548
    %v551 = vpack.i.b16 %v519, %v519
    %v553 = vlaneseq
    %v554 = vshrl.u32 %v553, 7
    %v555 = vsub.s32 0, %v554
    %v556 = vrot.slane %v551, %v555
    %v558 = vpack.i.b16 %v520, %v520
    %v560 = vlaneseq
    %v561 = vshrl.u32 %v560, 7
    %v562 = vsub.s32 0, %v561
    %v563 = vrot.slane %v558, %v562
    %v565 = vpack.i.b16 %v521, %v521
    %v567 = vlaneseq
    %v568 = vshrl.u32 %v567, 7
    %v569 = vsub.s32 0, %v568
    %v570 = vrot.slane %v565, %v569
    %v578 = vunpack.c.l.b16 %v528
    %v579 = vunpack.c.l.b16 %v535
    %v580 = vunpack.c.l.b16 %v542
    %v581 = vunpack.c.l.b16 %v549
    %v582 = vunpack.c.l.b16 %v556
    %v583 = vunpack.c.l.b16 %v563
    %v584 = vunpack.c.l.b16 %v570
    %v585 = vpack.c.b16 %v579, %v578
    %v586 = vpack.c.b16 %v581, %v580
    %v587 = vpack.c.b16 %v583, %v582
    %v588 = vpack.c.b16 %v584, %v584
    %v593 = vadd.bf16 %v475, %v585
    %v594 = vadd.bf16 %v476, %v586
    %v595 = vadd.bf16 %v477, %v587
    %v596 = vadd.bf16 %v478, %v588
    %v597 = vld [vmem:[#allocation7] sm:$0xf]
    %v598 = vld [vmem:[#allocation7 + $0x4] sm:$0xf]
    %v599 = vld [vmem:[#allocation7 + $0x8] sm:$0xf]
    %v600 = vld [vmem:[#allocation7 + $0xc] sm:$0xf]
    %v601 = vld [vmem:[#allocation7 + $0x10] sm:$0xf]
    %v602 = vld [vmem:[#allocation7 + $0x14] sm:$0xf]
    %v603 = vld [vmem:[#allocation7 + $0x18] sm:$0xf]
    %v604 = vld [vmem:[#allocation7 + $0x1c] sm:$0xf]
    %v605 = vld [vmem:[#allocation7 + $0x20] sm:$0xf]
    %v606 = vld [vmem:[#allocation7 + $0x24] sm:$0xf]
    %v607 = vld [vmem:[#allocation7 + $0x28] sm:$0xf]
    %v608 = vld [vmem:[#allocation7 + $0x2c] sm:$0xf]
    %v609 = vld [vmem:[#allocation7 + $0x30] sm:$0xf]
    %v610 = vld [vmem:[#allocation7 + $0x34] sm:$0xf]
    %v611 = vld [vmem:[#allocation7 + $0x38] sm:$0xf]
    %v612 = vld [vmem:[#allocation7 + $0x3c] sm:$0xf]
    %v613 = vld [vmem:[#allocation7 + $0x40] sm:$0xf]
    %v614 = vld [vmem:[#allocation7 + $0x44] sm:$0xf]
    %v615 = vld [vmem:[#allocation7 + $0x48] sm:$0xf]
    %v616 = vld [vmem:[#allocation7 + $0x4c] sm:$0xf]
    %v617 = vld [vmem:[#allocation7 + $0x50] sm:$0xf]
    %v618 = vld [vmem:[#allocation7 + $0x54] sm:$0xf]
    %v619 = vld [vmem:[#allocation7 + $0x58] sm:$0xf]
    %v620 = vld [vmem:[#allocation7 + $0x5c] sm:$0xf]
    %v621 = vld [vmem:[#allocation7 + $0x60] sm:$0xf]
    %v622 = vld [vmem:[#allocation7 + $0x64] sm:$0xf]
    %v623 = vld [vmem:[#allocation7 + $0x68] sm:$0xf]
    %v624 = vld [vmem:[#allocation7 + $0x6c] sm:$0xf]
    %v625 = vld [vmem:[#allocation7 + $0x70] sm:$0xf]
    %v626 = vld [vmem:[#allocation7 + $0x74] sm:$0xf]
    %v627 = vld [vmem:[#allocation7 + $0x78] sm:$0xf]
    %v628 = vld [vmem:[#allocation7 + $0x7c] sm:$0xf]
    %v629 = vld [vmem:[#allocation7 + $0x80] sm:$0xf]
    %v630 = vld [vmem:[#allocation7 + $0x84] sm:$0xf]
    %v631 = vld [vmem:[#allocation7 + $0x88] sm:$0xf]
    %v632 = vld [vmem:[#allocation7 + $0x8c] sm:$0xf]
    %v633 = vld [vmem:[#allocation7 + $0x90] sm:$0xf]
    %v634 = vld [vmem:[#allocation7 + $0x94] sm:$0xf]
    %v635 = vld [vmem:[#allocation7 + $0x98] sm:$0xf]
    %v636 = vld [vmem:[#allocation7 + $0x9c] sm:$0xf]
    %v637 = vld [vmem:[#allocation7 + $0xa0] sm:$0xf]
    %v638 = vld [vmem:[#allocation7 + $0xa4] sm:$0xf]
    %v639 = vld [vmem:[#allocation7 + $0xa8] sm:$0xf]
    %v640 = vld [vmem:[#allocation7 + $0xac] sm:$0xf]
    %v641 = vld [vmem:[#allocation7 + $0xb0] sm:$0xf]
    %v642 = vld [vmem:[#allocation7 + $0xb4] sm:$0xf]
    %v643 = vld [vmem:[#allocation7 + $0xb8] sm:$0xf]
    %v644 = vld [vmem:[#allocation7 + $0xbc] sm:$0xf]
    %v645 = vld [vmem:[#allocation7 + $0xc0] sm:$0xf]
    %v646 = vld [vmem:[#allocation7 + $0xc4] sm:$0xf]
    %v647 = vld [vmem:[#allocation7 + $0xc8] sm:$0xf]
    %v648 = vld [vmem:[#allocation7 + $0xcc] sm:$0xf]
    %v649 = vld [vmem:[#allocation7 + $0xd0] sm:$0xf]
    %v650 = vld [vmem:[#allocation7 + $0xd4] sm:$0xf]
    %v651 = vld [vmem:[#allocation7 + $0xd8] sm:$0xf]
    %v652 = vld [vmem:[#allocation7 + $0xdc] sm:$0xf]
    %v653 = vld [vmem:[#allocation7 + $0xe0] sm:$0xf]
    %v654 = vld [vmem:[#allocation7 + $0xe4] sm:$0xf]
    %v655 = vld [vmem:[#allocation7 + $0xe8] sm:$0xf]
    %v656 = vld [vmem:[#allocation7 + $0xec] sm:$0xf]
    %v657 = vld [vmem:[#allocation7 + $0xf0] sm:$0xf]
    %v658 = vld [vmem:[#allocation7 + $0xf4] sm:$0xf]
    %v659 = vld [vmem:[#allocation7 + $0xf8] sm:$0xf]
    %v660 = vld [vmem:[#allocation7 + $0xfc] sm:$0xf]
    %v661 = vld [vmem:[#allocation7 + $0x100] sm:$0xf]
    %v662 = vld [vmem:[#allocation7 + $0x104] sm:$0xf]
    %v663 = vld [vmem:[#allocation7 + $0x108] sm:$0xf]
    %v664 = vld [vmem:[#allocation7 + $0x10c] sm:$0xf]
    %v665 = vld [vmem:[#allocation7 + $0x110] sm:$0xf]
    %v666 = vld [vmem:[#allocation7 + $0x114] sm:$0xf]
    %v667 = vld [vmem:[#allocation7 + $0x118] sm:$0xf]
    %v668 = vld [vmem:[#allocation7 + $0x11c] sm:$0xf]
    %v669 = vld [vmem:[#allocation7 + $0x120] sm:$0xf]
    %v670 = vld [vmem:[#allocation7 + $0x124] sm:$0xf]
    %v671 = vld [vmem:[#allocation7 + $0x128] sm:$0xf]
    %v672 = vld [vmem:[#allocation7 + $0x12c] sm:$0xf]
    %v673 = vld [vmem:[#allocation7 + $0x130] sm:$0xf]
    %v674 = vld [vmem:[#allocation7 + $0x134] sm:$0xf]
    %v675 = vld [vmem:[#allocation7 + $0x138] sm:$0xf]
    %v676 = vld [vmem:[#allocation7 + $0x13c] sm:$0xf]
    %v677 = vld [vmem:[#allocation7 + $0x140] sm:$0xf]
    %v678 = vld [vmem:[#allocation7 + $0x144] sm:$0xf]
    %v679 = vld [vmem:[#allocation7 + $0x148] sm:$0xf]
    %v680 = vld [vmem:[#allocation7 + $0x14c] sm:$0xf]
    %v681 = vld [vmem:[#allocation7 + $0x150] sm:$0xf]
    %v682 = vld [vmem:[#allocation7 + $0x154] sm:$0xf]
    %v683 = vld [vmem:[#allocation7 + $0x158] sm:$0xf]
    %v684 = vld [vmem:[#allocation7 + $0x15c] sm:$0xf]
    %v685 = vld [vmem:[#allocation7 + $0x160] sm:$0xf]
    %v686 = vld [vmem:[#allocation7 + $0x164] sm:$0xf]
    %v687 = vld [vmem:[#allocation7 + $0x168] sm:$0xf]
    %v688 = vld [vmem:[#allocation7 + $0x16c] sm:$0xf]
    %v689 = vld [vmem:[#allocation7 + $0x170] sm:$0xf]
    %v690 = vld [vmem:[#allocation7 + $0x174] sm:$0xf]
    %v691 = vld [vmem:[#allocation7 + $0x178] sm:$0xf]
    %v692 = vld [vmem:[#allocation7 + $0x17c] sm:$0xf]
    %v693 = vld [vmem:[#allocation7 + $0x180] sm:$0xf]
    %v694 = vld [vmem:[#allocation7 + $0x184] sm:$0xf]
    %v695 = vld [vmem:[%s4] sm:$0x1]
    %v697 = vlaneseq
    %v698 = vshrl.u32 %v697, 7
    %v699 = vsub.s32 0, %v698
    %v700 = vrot.slane %v695, %v699
    %v706 = vunpack.c.l.b16 %v593
    %v707 = vunpack.c.h.b16 %v593
    %v708 = vunpack.c.l.b16 %v594
    %v709 = vunpack.c.h.b16 %v594
    %v710 = vunpack.c.l.b16 %v595
    %v711 = vunpack.c.h.b16 %v595
    %v712 = vunpack.c.l.b16 %v596
    %v713 = vpack.c.b16 %v706, %v706
    %v714 = vpack.c.b16 %v707, %v707
    %v715 = vpack.c.b16 %v708, %v708
    %v716 = vpack.c.b16 %v709, %v709
    %v717 = vpack.c.b16 %v710, %v710
    %v718 = vpack.c.b16 %v711, %v711
    %v719 = vpack.c.b16 %v712, %v712
    %v824 = vunpack.c.l.b16 %v597
    %v825 = vunpack.c.l.b16 %v598
    %v826 = vunpack.c.l.b16 %v599
    %v827 = vunpack.c.l.b16 %v600
    %v828 = vunpack.c.l.b16 %v601
    %v829 = vunpack.c.l.b16 %v602
    %v830 = vunpack.c.l.b16 %v603
    %v831 = vunpack.c.l.b16 %v604
    %v832 = vunpack.c.l.b16 %v605
    %v833 = vunpack.c.l.b16 %v606
    %v834 = vunpack.c.l.b16 %v607
    %v835 = vunpack.c.l.b16 %v608
    %v836 = vunpack.c.l.b16 %v609
    %v837 = vunpack.c.l.b16 %v610
    %v838 = vunpack.c.l.b16 %v611
    %v839 = vunpack.c.l.b16 %v612
    %v840 = vunpack.c.l.b16 %v613
    %v841 = vunpack.c.l.b16 %v614
    %v842 = vunpack.c.l.b16 %v615
    %v843 = vunpack.c.l.b16 %v616
    %v844 = vunpack.c.l.b16 %v617
    %v845 = vunpack.c.l.b16 %v618
    %v846 = vunpack.c.l.b16 %v619
    %v847 = vunpack.c.l.b16 %v620
    %v848 = vunpack.c.l.b16 %v621
    %v849 = vunpack.c.l.b16 %v622
    %v850 = vunpack.c.l.b16 %v623
    %v851 = vunpack.c.l.b16 %v624
    %v852 = vunpack.c.l.b16 %v625
    %v853 = vunpack.c.l.b16 %v626
    %v854 = vunpack.c.l.b16 %v627
    %v855 = vunpack.c.l.b16 %v628
    %v856 = vunpack.c.l.b16 %v629
    %v857 = vunpack.c.l.b16 %v630
    %v858 = vunpack.c.l.b16 %v631
    %v859 = vunpack.c.l.b16 %v632
    %v860 = vunpack.c.l.b16 %v633
    %v861 = vunpack.c.l.b16 %v634
    %v862 = vunpack.c.l.b16 %v635
    %v863 = vunpack.c.l.b16 %v636
    %v864 = vunpack.c.l.b16 %v637
    %v865 = vunpack.c.l.b16 %v638
    %v866 = vunpack.c.l.b16 %v639
    %v867 = vunpack.c.l.b16 %v640
    %v868 = vunpack.c.l.b16 %v641
    %v869 = vunpack.c.l.b16 %v642
    %v870 = vunpack.c.l.b16 %v643
    %v871 = vunpack.c.l.b16 %v644
    %v872 = vunpack.c.l.b16 %v645
    %v873 = vunpack.c.l.b16 %v646
    %v874 = vunpack.c.l.b16 %v647
    %v875 = vunpack.c.l.b16 %v648
    %v876 = vunpack.c.l.b16 %v649
    %v877 = vunpack.c.l.b16 %v650
    %v878 = vunpack.c.l.b16 %v651
    %v879 = vunpack.c.l.b16 %v652
    %v880 = vunpack.c.l.b16 %v653
    %v881 = vunpack.c.l.b16 %v654
    %v882 = vunpack.c.l.b16 %v655
    %v883 = vunpack.c.l.b16 %v656
    %v884 = vunpack.c.l.b16 %v657
    %v885 = vunpack.c.l.b16 %v658
    %v886 = vunpack.c.l.b16 %v659
    %v887 = vunpack.c.l.b16 %v660
    %v888 = vunpack.c.l.b16 %v661
    %v889 = vunpack.c.l.b16 %v662
    %v890 = vunpack.c.l.b16 %v663
    %v891 = vunpack.c.l.b16 %v664
    %v892 = vunpack.c.l.b16 %v665
    %v893 = vunpack.c.l.b16 %v666
    %v894 = vunpack.c.l.b16 %v667
    %v895 = vunpack.c.l.b16 %v668
    %v896 = vunpack.c.l.b16 %v669
    %v897 = vunpack.c.l.b16 %v670
    %v898 = vunpack.c.l.b16 %v671
    %v899 = vunpack.c.l.b16 %v672
    %v900 = vunpack.c.l.b16 %v673
    %v901 = vunpack.c.l.b16 %v674
    %v902 = vunpack.c.l.b16 %v675
    %v903 = vunpack.c.l.b16 %v676
    %v904 = vunpack.c.l.b16 %v677
    %v905 = vunpack.c.l.b16 %v678
    %v906 = vunpack.c.l.b16 %v679
    %v907 = vunpack.c.l.b16 %v680
    %v908 = vunpack.c.l.b16 %v681
    %v909 = vunpack.c.l.b16 %v682
    %v910 = vunpack.c.l.b16 %v683
    %v911 = vunpack.c.l.b16 %v684
    %v912 = vunpack.c.l.b16 %v685
    %v913 = vunpack.c.l.b16 %v686
    %v914 = vunpack.c.l.b16 %v687
    %v915 = vunpack.c.l.b16 %v688
    %v916 = vunpack.c.l.b16 %v689
    %v917 = vunpack.c.l.b16 %v690
    %v918 = vunpack.c.l.b16 %v691
    %v919 = vunpack.c.l.b16 %v692
    %v920 = vunpack.c.l.b16 %v693
    %v921 = vunpack.c.l.b16 %v694
    %v922 = vpack.c.b16 %v825, %v824
    %v923 = vpack.c.b16 %v827, %v826
    %v924 = vpack.c.b16 %v829, %v828
    %v925 = vpack.c.b16 %v831, %v830
    %v926 = vpack.c.b16 %v833, %v832
    %v927 = vpack.c.b16 %v835, %v834
    %v928 = vpack.c.b16 %v837, %v836
    %v929 = vpack.c.b16 %v839, %v838
    %v930 = vpack.c.b16 %v841, %v840
    %v931 = vpack.c.b16 %v843, %v842
    %v932 = vpack.c.b16 %v845, %v844
    %v933 = vpack.c.b16 %v847, %v846
    %v934 = vpack.c.b16 %v849, %v848
    %v935 = vpack.c.b16 %v851, %v850
    %v936 = vpack.c.b16 %v853, %v852
    %v937 = vpack.c.b16 %v855, %v854
    %v938 = vpack.c.b16 %v857, %v856
    %v939 = vpack.c.b16 %v859, %v858
    %v940 = vpack.c.b16 %v861, %v860
    %v941 = vpack.c.b16 %v863, %v862
    %v942 = vpack.c.b16 %v865, %v864
    %v943 = vpack.c.b16 %v867, %v866
    %v944 = vpack.c.b16 %v869, %v868
    %v945 = vpack.c.b16 %v871, %v870
    %v946 = vpack.c.b16 %v873, %v872
    %v947 = vpack.c.b16 %v875, %v874
    %v948 = vpack.c.b16 %v877, %v876
    %v949 = vpack.c.b16 %v879, %v878
    %v950 = vpack.c.b16 %v881, %v880
    %v951 = vpack.c.b16 %v883, %v882
    %v952 = vpack.c.b16 %v885, %v884
    %v953 = vpack.c.b16 %v887, %v886
    %v954 = vpack.c.b16 %v889, %v888
    %v955 = vpack.c.b16 %v891, %v890
    %v956 = vpack.c.b16 %v893, %v892
    %v957 = vpack.c.b16 %v895, %v894
    %v958 = vpack.c.b16 %v897, %v896
    %v959 = vpack.c.b16 %v899, %v898
    %v960 = vpack.c.b16 %v901, %v900
    %v961 = vpack.c.b16 %v903, %v902
    %v962 = vpack.c.b16 %v905, %v904
    %v963 = vpack.c.b16 %v907, %v906
    %v964 = vpack.c.b16 %v909, %v908
    %v965 = vpack.c.b16 %v911, %v910
    %v966 = vpack.c.b16 %v913, %v912
    %v967 = vpack.c.b16 %v915, %v914
    %v968 = vpack.c.b16 %v917, %v916
    %v969 = vpack.c.b16 %v919, %v918
    %v970 = vpack.c.b16 %v921, %v920
    %v1021 = vsel %vm145, %v719, 0
    %1023 = vmatprep.subr.bf16.mxu0 0
    %1024 = vmatpush1.bf16.msra.mxu0 %v922
    %1025 = vmatprep.subr.bf16.mxu0 0
    %1026 = vmatpush1.bf16.msra.mxu0 %v923
    %1027 = vmatprep.subr.bf16.mxu0 0
    %1028 = vmatpush1.bf16.msra.mxu0 %v924
    %1029 = vmatprep.subr.bf16.mxu0 0
    %1030 = vmatpush1.bf16.msra.mxu0 %v925
    %1031 = vmatprep.subr.bf16.mxu0 0
    %1032 = vmatpush1.bf16.msra.mxu0 %v926
    %1033 = vmatprep.subr.bf16.mxu0 0
    %1034 = vmatpush1.bf16.msra.mxu0 %v927
    %1035 = vmatprep.subr.bf16.mxu0 0
    %1036 = vmatpush1.bf16.msra.mxu0 %v928
    %1037 = vmatprep.subr.bf16.mxu0 0
    %1038 = vmatpush1.bf16.msra.mxu0 %v929
    %1039 = vmatprep.subr.bf16.mxu0 0
    %1040 = vmatpush1.bf16.msra.mxu0 %v930
    %1041 = vmatprep.subr.bf16.mxu0 0
    %1042 = vmatpush1.bf16.msra.mxu0 %v931
    %1043 = vmatprep.subr.bf16.mxu0 0
    %1044 = vmatpush1.bf16.msra.mxu0 %v932
    %1045 = vmatprep.subr.bf16.mxu0 0
    %1046 = vmatpush1.bf16.msra.mxu0 %v933
    %1047 = vmatprep.subr.bf16.mxu0 0
    %1048 = vmatpush1.bf16.msra.mxu0 %v934
    %1049 = vmatprep.subr.bf16.mxu0 0
    %1050 = vmatpush1.bf16.msra.mxu0 %v935
    %1051 = vmatprep.subr.bf16.mxu0 0
    %1052 = vmatpush1.bf16.msra.mxu0 %v936
    %1053 = vmatprep.subr.bf16.mxu0 0
    %1054 = vmatpush1.bf16.msra.mxu0 %v937
    %1055 = vmatprep.mubr.bf16.mxu0 %v714
    %1056 = vmatmul.mubr.bf16.gmra.mrb[0].mxu0 %v713
    %v1057 = vpop.f32.mrb[0].mxu0
    %v1058 = vadd.f32 %v700, %v1057
    %v1059 = vpop.f32.mrb[0].mxu0
    %v1060 = vpop.f32.mrb[0].mxu0
    %v1061 = vpop.f32.mrb[0].mxu0
    %1062 = vdwg.mxu0
    %1063 = vmatprep.subr.bf16.mxu0 0
    %1064 = vmatpush1.bf16.msra.mxu0 %v938
    %1065 = vmatprep.subr.bf16.mxu0 0
    %1066 = vmatpush1.bf16.msra.mxu0 %v939
    %1067 = vmatprep.subr.bf16.mxu0 0
    %1068 = vmatpush1.bf16.msra.mxu0 %v940
    %1069 = vmatprep.subr.bf16.mxu0 0
    %1070 = vmatpush1.bf16.msra.mxu0 %v941
    %1071 = vmatprep.subr.bf16.mxu0 0
    %1072 = vmatpush1.bf16.msra.mxu0 %v942
    %1073 = vmatprep.subr.bf16.mxu0 0
    %1074 = vmatpush1.bf16.msra.mxu0 %v943
    %1075 = vmatprep.subr.bf16.mxu0 0
    %1076 = vmatpush1.bf16.msra.mxu0 %v944
    %1077 = vmatprep.subr.bf16.mxu0 0
    %1078 = vmatpush1.bf16.msra.mxu0 %v945
    %1079 = vmatprep.subr.bf16.mxu0 0
    %1080 = vmatpush1.bf16.msra.mxu0 %v946
    %1081 = vmatprep.subr.bf16.mxu0 0
    %1082 = vmatpush1.bf16.msra.mxu0 %v947
    %1083 = vmatprep.subr.bf16.mxu0 0
    %1084 = vmatpush1.bf16.msra.mxu0 %v948
    %1085 = vmatprep.subr.bf16.mxu0 0
    %1086 = vmatpush1.bf16.msra.mxu0 %v949
    %1087 = vmatprep.subr.bf16.mxu0 0
    %1088 = vmatpush1.bf16.msra.mxu0 %v950
    %1089 = vmatprep.subr.bf16.mxu0 0
    %1090 = vmatpush1.bf16.msra.mxu0 %v951
    %1091 = vmatprep.subr.bf16.mxu0 0
    %1092 = vmatpush1.bf16.msra.mxu0 %v952
    %1093 = vmatprep.subr.bf16.mxu0 0
    %1094 = vmatpush1.bf16.msra.mxu0 %v953
    %1095 = vmatprep.mubr.bf16.mxu0 %v716
    %1096 = vmatmul.mubr.bf16.gmra.mrb[0].mxu0 %v715
    %v1097 = vpop.f32.mrb[0].mxu0
    %v1098 = vadd.f32 %v1058, %v1097
    %v1099 = vpop.f32.mrb[0].mxu0
    %v1100 = vpop.f32.mrb[0].mxu0
    %v1101 = vpop.f32.mrb[0].mxu0
    %1102 = vdwg.mxu0
    %1103 = vmatprep.subr.bf16.mxu0 0
    %1104 = vmatpush1.bf16.msra.mxu0 %v954
    %1105 = vmatprep.subr.bf16.mxu0 0
    %1106 = vmatpush1.bf16.msra.mxu0 %v955
    %1107 = vmatprep.subr.bf16.mxu0 0
    %1108 = vmatpush1.bf16.msra.mxu0 %v956
    %1109 = vmatprep.subr.bf16.mxu0 0
    %1110 = vmatpush1.bf16.msra.mxu0 %v957
    %1111 = vmatprep.subr.bf16.mxu0 0
    %1112 = vmatpush1.bf16.msra.mxu0 %v958
    %1113 = vmatprep.subr.bf16.mxu0 0
    %1114 = vmatpush1.bf16.msra.mxu0 %v959
    %1115 = vmatprep.subr.bf16.mxu0 0
    %1116 = vmatpush1.bf16.msra.mxu0 %v960
    %1117 = vmatprep.subr.bf16.mxu0 0
    %1118 = vmatpush1.bf16.msra.mxu0 %v961
    %1119 = vmatprep.subr.bf16.mxu0 0
    %1120 = vmatpush1.bf16.msra.mxu0 %v962
    %1121 = vmatprep.subr.bf16.mxu0 0
    %1122 = vmatpush1.bf16.msra.mxu0 %v963
    %1123 = vmatprep.subr.bf16.mxu0 0
    %1124 = vmatpush1.bf16.msra.mxu0 %v964
    %1125 = vmatprep.subr.bf16.mxu0 0
    %1126 = vmatpush1.bf16.msra.mxu0 %v965
    %1127 = vmatprep.subr.bf16.mxu0 0
    %1128 = vmatpush1.bf16.msra.mxu0 %v966
    %1129 = vmatprep.subr.bf16.mxu0 0
    %1130 = vmatpush1.bf16.msra.mxu0 %v967
    %1131 = vmatprep.subr.bf16.mxu0 0
    %1132 = vmatpush1.bf16.msra.mxu0 %v968
    %1133 = vmatprep.subr.bf16.mxu0 0
    %1134 = vmatpush1.bf16.msra.mxu0 %v969
    %1135 = vmatprep.mubr.bf16.mxu0 %v718
    %1136 = vmatmul.mubr.bf16.gmra.mrb[0].mxu0 %v717
    %v1137 = vpop.f32.mrb[0].mxu0
    %v1138 = vadd.f32 %v1098, %v1137
    %v1139 = vpop.f32.mrb[0].mxu0
    %v1140 = vpop.f32.mrb[0].mxu0
    %v1141 = vpop.f32.mrb[0].mxu0
    %1142 = vdwg.mxu0
    %1143 = vmatprep.subr.bf16.mxu0 0
    %1144 = vmatpush1.bf16.msra.mxu0 %v970
    %1145 = vmatprep.subr.bf16.mxu0 0
    %1146 = vmatpush1.bf16.msra.mxu0 0
    %1147 = vmatprep.subr.bf16.mxu0 0
    %1148 = vmatpush1.bf16.msra.mxu0 0
    %1149 = vmatprep.subr.bf16.mxu0 0
    %1150 = vmatpush1.bf16.msra.mxu0 0
    %1151 = vmatprep.subr.bf16.mxu0 0
    %1152 = vmatpush1.bf16.msra.mxu0 0
    %1153 = vmatprep.subr.bf16.mxu0 0
    %1154 = vmatpush1.bf16.msra.mxu0 0
    %1155 = vmatprep.subr.bf16.mxu0 0
    %1156 = vmatpush1.bf16.msra.mxu0 0
    %1157 = vmatprep.subr.bf16.mxu0 0
    %1158 = vmatpush1.bf16.msra.mxu0 0
    %1159 = vmatprep.subr.bf16.mxu0 0
    %1160 = vmatpush1.bf16.msra.mxu0 0
    %1161 = vmatprep.subr.bf16.mxu0 0
    %1162 = vmatpush1.bf16.msra.mxu0 0
    %1163 = vmatprep.subr.bf16.mxu0 0
    %1164 = vmatpush1.bf16.msra.mxu0 0
    %1165 = vmatprep.subr.bf16.mxu0 0
    %1166 = vmatpush1.bf16.msra.mxu0 0
    %1167 = vmatprep.subr.bf16.mxu0 0
    %1168 = vmatpush1.bf16.msra.mxu0 0
    %1169 = vmatprep.subr.bf16.mxu0 0
    %1170 = vmatpush1.bf16.msra.mxu0 0
    %1171 = vmatprep.subr.bf16.mxu0 0
    %1172 = vmatpush1.bf16.msra.mxu0 0
    %1173 = vmatprep.subr.bf16.mxu0 0
    %1174 = vmatpush1.bf16.msra.mxu0 0
    %1175 = vmatprep.mubr.bf16.mxu0 0
    %1176 = vmatmul.mubr.bf16.gmra.mrb[0].mxu0 %v1021
    %v1177 = vpop.f32.mrb[0].mxu0
    %v1178 = vadd.f32 %v1138, %v1177
    %v1179 = vpop.f32.mrb[0].mxu0
    %v1180 = vpop.f32.mrb[0].mxu0
    %v1181 = vpop.f32.mrb[0].mxu0
    %1182 = vdwg.mxu0
    %v1183 = vmax.f32 %v1178, 0.0
    %v1184 = vpack.c.bf16 %v1183, %v1183
    %v1185 = vld [vmem:[#allocation8] sm:$0xf]
    %v1186 = vld [vmem:[#allocation8 + $0x4] sm:$0xf]
    %v1187 = vld [vmem:[#allocation8 + $0x8] sm:$0xf]
    %v1188 = vld [vmem:[#allocation8 + $0xc] sm:$0xf]
    %v1189 = vld [vmem:[#allocation8 + $0x10] sm:$0xf]
    %v1190 = vld [vmem:[#allocation8 + $0x14] sm:$0xf]
    %v1191 = vld [vmem:[#allocation8 + $0x18] sm:$0xf]
    %v1192 = vld [vmem:[#allocation8 + $0x1c] sm:$0xf]
    %v1193 = vld [vmem:[#allocation8 + $0x20] sm:$0xf]
    %v1194 = vld [vmem:[#allocation8 + $0x24] sm:$0xf]
    %v1195 = vld [vmem:[#allocation8 + $0x28] sm:$0xf]
    %v1196 = vld [vmem:[#allocation8 + $0x2c] sm:$0xf]
    %v1197 = vld [vmem:[#allocation8 + $0x30] sm:$0xf]
    %v1198 = vld [vmem:[#allocation8 + $0x34] sm:$0xf]
    %v1199 = vld [vmem:[#allocation8 + $0x38] sm:$0xf]
    %v1200 = vld [vmem:[#allocation8 + $0x3c] sm:$0xf]
    %v1201 = vld [vmem:[%s6] sm:$0x1]
    %v1203 = vlaneseq
    %v1204 = vshrl.u32 %v1203, 7
    %v1205 = vsub.s32 0, %v1204
    %v1206 = vrot.slane %v1201, %v1205
    %v1224 = vunpack.c.l.b16 %v1185
    %v1225 = vunpack.c.l.b16 %v1186
    %v1226 = vunpack.c.l.b16 %v1187
    %v1227 = vunpack.c.l.b16 %v1188
    %v1228 = vunpack.c.l.b16 %v1189
    %v1229 = vunpack.c.l.b16 %v1190
    %v1230 = vunpack.c.l.b16 %v1191
    %v1231 = vunpack.c.l.b16 %v1192
    %v1232 = vunpack.c.l.b16 %v1193
    %v1233 = vunpack.c.l.b16 %v1194
    %v1234 = vunpack.c.l.b16 %v1195
    %v1235 = vunpack.c.l.b16 %v1196
    %v1236 = vunpack.c.l.b16 %v1197
    %v1237 = vunpack.c.l.b16 %v1198
    %v1238 = vunpack.c.l.b16 %v1199
    %v1239 = vunpack.c.l.b16 %v1200
    %v1240 = vpack.c.b16 %v1225, %v1224
    %v1241 = vpack.c.b16 %v1227, %v1226
    %v1242 = vpack.c.b16 %v1229, %v1228
    %v1243 = vpack.c.b16 %v1231, %v1230
    %v1244 = vpack.c.b16 %v1233, %v1232
    %v1245 = vpack.c.b16 %v1235, %v1234
    %v1246 = vpack.c.b16 %v1237, %v1236
    %v1247 = vpack.c.b16 %v1239, %v1238
    %1256 = vmatprep.subr.bf16.mxu0 0
    %1257 = vmatpush1.bf16.msra.mxu0 %v1240
    %1258 = vmatprep.subr.bf16.mxu0 0
    %1259 = vmatpush1.bf16.msra.mxu0 %v1241
    %1260 = vmatprep.subr.bf16.mxu0 0
    %1261 = vmatpush1.bf16.msra.mxu0 %v1242
    %1262 = vmatprep.subr.bf16.mxu0 0
    %1263 = vmatpush1.bf16.msra.mxu0 %v1243
    %1264 = vmatprep.subr.bf16.mxu0 0
    %1265 = vmatpush1.bf16.msra.mxu0 %v1244
    %1266 = vmatprep.subr.bf16.mxu0 0
    %1267 = vmatpush1.bf16.msra.mxu0 %v1245
    %1268 = vmatprep.subr.bf16.mxu0 0
    %1269 = vmatpush1.bf16.msra.mxu0 %v1246
    %1270 = vmatprep.subr.bf16.mxu0 0
    %1271 = vmatpush1.bf16.msra.mxu0 %v1247
    %1272 = vmatprep.subr.bf16.mxu0 0
    %1273 = vmatpush1.bf16.msra.mxu0 0
    %1274 = vmatprep.subr.bf16.mxu0 0
    %1275 = vmatpush1.bf16.msra.mxu0 0
    %1276 = vmatprep.subr.bf16.mxu0 0
    %1277 = vmatpush1.bf16.msra.mxu0 0
    %1278 = vmatprep.subr.bf16.mxu0 0
    %1279 = vmatpush1.bf16.msra.mxu0 0
    %1280 = vmatprep.subr.bf16.mxu0 0
    %1281 = vmatpush1.bf16.msra.mxu0 0
    %1282 = vmatprep.subr.bf16.mxu0 0
    %1283 = vmatpush1.bf16.msra.mxu0 0
    %1284 = vmatprep.subr.bf16.mxu0 0
    %1285 = vmatpush1.bf16.msra.mxu0 0
    %1286 = vmatprep.subr.bf16.mxu0 0
    %1287 = vmatpush1.bf16.msra.mxu0 0
    %1288 = vmatprep.mubr.bf16.mxu0 0
    %1289 = vmatmul.mubr.bf16.gmra.mrb[0].mxu0 %v1184
    %v1290 = vpop.f32.mrb[0].mxu0
    %v1291 = vadd.f32 %v1206, %v1290
    %v1292 = vpop.f32.mrb[0].mxu0
    %v1293 = vpop.f32.mrb[0].mxu0
    %v1294 = vpop.f32.mrb[0].mxu0
    %1295 = vdwg.mxu0
    %v1296 = vmax.f32 %v1291, 0.0
    %v1297 = vpack.c.bf16 %v1296, %v1296
    %v1298 = vld [vmem:[#allocation10] sm:$0xf]
    %v1299 = vld [vmem:[#allocation10 + $0x4] sm:$0xf]
    %v1300 = vld [vmem:[#allocation10 + $0x8] sm:$0xf]
    %v1301 = vld [vmem:[#allocation10 + $0xc] sm:$0xf]
    %v1302 = vld [vmem:[#allocation10 + $0x10] sm:$0xf]
    %v1303 = vld [vmem:[#allocation10 + $0x14] sm:$0xf]
    %v1304 = vld [vmem:[#allocation10 + $0x18] sm:$0xf]
    %v1305 = vld [vmem:[#allocation10 + $0x1c] sm:$0xf]
    %v1306 = vld [vmem:[#allocation10 + $0x20] sm:$0xf]
    %v1307 = vld [vmem:[#allocation10 + $0x24] sm:$0xf]
    %v1308 = vld [vmem:[#allocation10 + $0x28] sm:$0xf]
    %v1309 = vld [vmem:[#allocation10 + $0x2c] sm:$0xf]
    %v1310 = vld [vmem:[#allocation10 + $0x30] sm:$0xf]
    %v1311 = vld [vmem:[#allocation10 + $0x34] sm:$0xf]
    %v1312 = vld [vmem:[#allocation10 + $0x38] sm:$0xf]
    %v1313 = vld [vmem:[#allocation10 + $0x3c] sm:$0xf]
    %v1314 = vld [vmem:[%s8] sm:$0x1]
    %v1316 = vlaneseq
    %v1317 = vshrl.u32 %v1316, 7
    %v1318 = vsub.s32 0, %v1317
    %v1319 = vrot.slane %v1314, %v1318
    %v1337 = vunpack.c.l.b16 %v1298
    %v1338 = vunpack.c.l.b16 %v1299
    %v1339 = vunpack.c.l.b16 %v1300
    %v1340 = vunpack.c.l.b16 %v1301
    %v1341 = vunpack.c.l.b16 %v1302
    %v1342 = vunpack.c.l.b16 %v1303
    %v1343 = vunpack.c.l.b16 %v1304
    %v1344 = vunpack.c.l.b16 %v1305
    %v1345 = vunpack.c.l.b16 %v1306
    %v1346 = vunpack.c.l.b16 %v1307
    %v1347 = vunpack.c.l.b16 %v1308
    %v1348 = vunpack.c.l.b16 %v1309
    %v1349 = vunpack.c.l.b16 %v1310
    %v1350 = vunpack.c.l.b16 %v1311
    %v1351 = vunpack.c.l.b16 %v1312
    %v1352 = vunpack.c.l.b16 %v1313
    %v1353 = vpack.c.b16 %v1338, %v1337
    %v1354 = vpack.c.b16 %v1340, %v1339
    %v1355 = vpack.c.b16 %v1342, %v1341
    %v1356 = vpack.c.b16 %v1344, %v1343
    %v1357 = vpack.c.b16 %v1346, %v1345
    %v1358 = vpack.c.b16 %v1348, %v1347
    %v1359 = vpack.c.b16 %v1350, %v1349
    %v1360 = vpack.c.b16 %v1352, %v1351
    %1369 = vmatprep.subr.bf16.mxu0 0
    %1370 = vmatpush1.bf16.msra.mxu0 %v1353
    %1371 = vmatprep.subr.bf16.mxu0 0
    %1372 = vmatpush1.bf16.msra.mxu0 %v1354
    %1373 = vmatprep.subr.bf16.mxu0 0
    %1374 = vmatpush1.bf16.msra.mxu0 %v1355
    %1375 = vmatprep.subr.bf16.mxu0 0
    %1376 = vmatpush1.bf16.msra.mxu0 %v1356
    %1377 = vmatprep.subr.bf16.mxu0 0
    %1378 = vmatpush1.bf16.msra.mxu0 %v1357
    %1379 = vmatprep.subr.bf16.mxu0 0
    %1380 = vmatpush1.bf16.msra.mxu0 %v1358
    %1381 = vmatprep.subr.bf16.mxu0 0
    %1382 = vmatpush1.bf16.msra.mxu0 %v1359
    %1383 = vmatprep.subr.bf16.mxu0 0
    %1384 = vmatpush1.bf16.msra.mxu0 %v1360
    %1385 = vmatprep.subr.bf16.mxu0 0
    %1386 = vmatpush1.bf16.msra.mxu0 0
    %1387 = vmatprep.subr.bf16.mxu0 0
    %1388 = vmatpush1.bf16.msra.mxu0 0
    %1389 = vmatprep.subr.bf16.mxu0 0
    %1390 = vmatpush1.bf16.msra.mxu0 0
    %1391 = vmatprep.subr.bf16.mxu0 0
    %1392 = vmatpush1.bf16.msra.mxu0 0
    %1393 = vmatprep.subr.bf16.mxu0 0
    %1394 = vmatpush1.bf16.msra.mxu0 0
    %1395 = vmatprep.subr.bf16.mxu0 0
    %1396 = vmatpush1.bf16.msra.mxu0 0
    %1397 = vmatprep.subr.bf16.mxu0 0
    %1398 = vmatpush1.bf16.msra.mxu0 0
    %1399 = vmatprep.subr.bf16.mxu0 0
    %1400 = vmatpush1.bf16.msra.mxu0 0
    %1401 = vmatprep.mubr.bf16.mxu0 0
    %1402 = vmatmul.mubr.bf16.gmra.mrb[0].mxu0 %v1297
    %v1403 = vpop.f32.mrb[0].mxu0
    %v1404 = vadd.f32 %v1319, %v1403
    %v1405 = vpop.f32.mrb[0].mxu0
    %v1406 = vpop.f32.mrb[0].mxu0
    %v1407 = vpop.f32.mrb[0].mxu0
    %1408 = vdwg.mxu0
    %v1409 = vmax.f32 %v1404, 0.0
    %1410 = vst [vmem:[#allocation11] sm:$0xff] %v1409
    // Predicated region
    $region58: #{tpu_custom_call.1} parent=1 // pred_check
      _
    $region59: #{tpu_custom_call.1} parent=1 // pred_check_branch
      %1412 = sbr.rel (0) target = $region61
    $region60: #{tpu_custom_call.1} parent=1 // pred_region
      %s1414 = ssub.s32 128, 128
      %1415 = vsyncadd [#allocation4], %s1414
      %s1417 = sshll.u32 [#allocation11], 4
      %s1418 = int_to_ptr.vmem [resolvable:$true] %s1417
      %1420 = dma.vmem_to_hbm [thread:$0]  %s1418, 128, %s9, [#allocation4]
    $region61: #{tpu_custom_call.1} parent=1 // pred_fallthru
      _
    // Predicated region
    $region62: #{tpu_custom_call.1} parent=1 // pred_check
      _
    $region63: #{tpu_custom_call.1} parent=1 // pred_check_branch
      %1422 = sbr.rel (0) target = $region65
    $region64: #{tpu_custom_call.1} parent=1 // pred_region
      %1423 = dma.done [#allocation4], 128
    $region65: #{tpu_custom_call.1} parent=1 // pred_fallthru
      _
    %1424 = vsyncpa [#allocation3], 1
    %1425 = vsyncpa [#allocation6], 1
    %1426 = vsyncpa [#allocation9], 1
    %1427 = vsyncpa [#allocation4], 1

</llo_original>
